<compile_context>
chip_gen: v5e
topology: v5e:2x2
jax: 0.10.0
libtpu: 0.0.40
codegen_flags: <defaults>
</compile_context>

<pallas_src>
import functools

import jax
import jax.numpy as jnp
from jax.experimental import pallas as pl
from jax.experimental.pallas import tpu as pltpu


LANES = 128          # lane width / padded feature dim for every layer
MAX_BLOCK_B = 256    # rows per grid step (MXU height on v6e/v7x)


def actor_net_kernel(x_ref, w_ref, b_ref, out_ref):
    """x_ref: (TB, 128) compute-dtype; w_ref: (3, 128, 128) compute-dtype;
    b_ref: (8, 128) f32 (rows 0..2 = b1,b2,b3); out_ref: (TB, 128) f32."""
    x = x_ref[...]                                   # (TB, 128)

    w1 = w_ref[0]                                    # (128, 128) each
    w2 = w_ref[1]
    w3 = w_ref[2]
    b1 = b_ref[0:1, :]                               # (1, 128) f32
    b2 = b_ref[1:2, :]
    b3 = b_ref[2:3, :]

    # Layer 1: (TB,128) @ (128,128) -> f32 acc; ReLU in f32 on the VPU.
    h1 = jnp.dot(x, w1, preferred_element_type=jnp.float32) + b1
    h1 = jnp.maximum(h1, 0.0)                        # padded lanes stay 0

    # Layer 2.
    h2 = jnp.dot(h1.astype(w2.dtype), w2, preferred_element_type=jnp.float32) + b2
    h2 = jnp.maximum(h2, 0.0)

    # Layer 3 -> logits in lanes 0:2, zeros elsewhere (zero-padded W3/b3).
    logits = jnp.dot(h2.astype(w3.dtype), w3, preferred_element_type=jnp.float32) + b3

    # Softmax over the 2 real action logits; mask padded lanes to -1e30 so
    # they contribute exp(...) = 0. Stays in f32.
    lane = jax.lax.broadcasted_iota(jnp.int32, logits.shape, dimension=1)
    logits = jnp.where(lane < 2, logits, jnp.float32(-1e30))
    m = jnp.max(logits, axis=-1, keepdims=True)
    e = jnp.exp(logits - m)
    out_ref[...] = e / jnp.sum(e, axis=-1, keepdims=True)


def init_actor_params(key):
    """Deterministic init mirroring nn.Linear default U[-1/sqrt(fan_in), +1/sqrt(fan_in)].
    Weights kept in PyTorch (out_features, in_features) convention."""
    dims = [(64, 4), (32, 64), (2, 32)]
    params = []
    for (out_f, in_f) in dims:
        key, kw, kb = jax.random.split(key, 3)
        bound = 1.0 / jnp.sqrt(jnp.float32(in_f))
        w = jax.random.uniform(kw, (out_f, in_f), jnp.float32, -bound, bound)
        b = jax.random.uniform(kb, (out_f,), jnp.float32, -bound, bound)
        params += [w, b]
    return tuple(params)


def pack_actor_params(params, compute_dtype=jnp.float32):
    """One-time packing (do this at init, NOT per step): transpose to (in, out),
    zero-pad every layer to a 128x128 block, stack into a single weight slab,
    and pack the three biases into one (8, 128) f32 block."""
    w1, b1, w2, b2, w3, b3 = params

    def pad_wt(w):
        wt = w.T.astype(jnp.float32)                 # (in, out)
        blk = jnp.zeros((LANES, LANES), jnp.float32)
        return blk.at[: wt.shape[0], : wt.shape[1]].set(wt)

    w_slab = jnp.stack([pad_wt(w1), pad_wt(w2), pad_wt(w3)]).astype(compute_dtype)

    b_block = jnp.zeros((8, LANES), jnp.float32)
    b_block = b_block.at[0, : b1.shape[0]].set(b1)
    b_block = b_block.at[1, : b2.shape[0]].set(b2)
    b_block = b_block.at[2, : b3.shape[0]].set(b3)
    return w_slab, b_block


@jax.jit
def actor_net_forward(x, packed):
    """x: (4,) or (B, 4) float32 -> (2,) or (B, 2) action probabilities (f32)."""
    w_slab, b_block = packed
    compute_dtype = w_slab.dtype

    squeeze = x.ndim == 1
    if squeeze:
        x = x[None, :]
    batch = x.shape[0]

    # Pad batch to a multiple of 8 sublanes; tile at <=256 rows per grid step.
    b_pad = max(8, -(-batch // 8) * 8)
    if b_pad <= MAX_BLOCK_B:
        block_b = b_pad
    else:
        block_b = MAX_BLOCK_B
        b_pad = -(-b_pad // MAX_BLOCK_B) * MAX_BLOCK_B

    # Lane-dense input slab: real features in lanes 0:4, zeros elsewhere
    # (zero lanes hit zero-padded rows of W1, so they contribute nothing).
    x_pad = jnp.zeros((b_pad, LANES), compute_dtype)
    x_pad = x_pad.at[:batch, :4].set(x.astype(compute_dtype))

    grid = (b_pad // block_b,)
    out = pl.pallas_call(
        actor_net_kernel,
        out_shape=jax.ShapeDtypeStruct((b_pad, LANES), jnp.float32),
        grid=grid,
        in_specs=[
            pl.BlockSpec((block_b, LANES), lambda i: (i, 0)),        # activations
            pl.BlockSpec((3, LANES, LANES), lambda i: (0, 0, 0)),    # weight slab (resident)
            pl.BlockSpec((8, LANES), lambda i: (0, 0)),              # bias block (resident)
        ],
        out_specs=pl.BlockSpec((block_b, LANES), lambda i: (i, 0)),
        compiler_params=pltpu.CompilerParams(
            dimension_semantics=("parallel",),                       # megacore on v7x
        ),
    )(x_pad, w_slab, b_block)

    probs = out[:batch, :2]
    return probs[0] if squeeze else probs


def actor_net_reference(x, params):
    """Plain-JAX reference matching the PyTorch forward (per-sample softmax)."""
    w1, b1, w2, b2, w3, b3 = params
    h1 = jnp.maximum(x @ w1.T + b1, 0.0)
    h2 = jnp.maximum(h1 @ w2.T + b2, 0.0)
    logits = h2 @ w3.T + b3
    return jax.nn.softmax(logits, axis=-1)


if __name__ == "__main__":
    key = jax.random.PRNGKey(0)
    pkey, xkey = jax.random.split(key)
    params = init_actor_params(pkey)

    # --- single CartPole state, f32 operands (tight tolerance) ---------------
    x_single = jax.random.normal(xkey, (4,), jnp.float32)
    packed_f32 = pack_actor_params(params, jnp.float32)
    p1 = jax.block_until_ready(actor_net_forward(x_single, packed_f32))
    r1 = actor_net_reference(x_single, params)
    assert p1.shape == (2,)
    assert jnp.allclose(p1, r1, atol=1e-5, rtol=1e-5), (p1, r1)
    assert jnp.allclose(jnp.sum(p1), 1.0, atol=1e-5)

    # --- batch of parallel envs, bf16 MXU operands / f32 accumulate ----------
    x_batch = jax.random.normal(jax.random.fold_in(xkey, 1), (8, 4), jnp.float32)
    packed_bf16 = pack_actor_params(params, jnp.bfloat16)
    pb = jax.block_until_ready(actor_net_forward(x_batch, packed_bf16))
    rb = actor_net_reference(x_batch, params)
    assert pb.shape == (8, 2)
    assert jnp.allclose(pb, rb, atol=2e-2, rtol=2e-2), (pb, rb)
    assert jnp.allclose(jnp.sum(pb, axis=-1), 1.0, atol=1e-3)

    print("KERNEL_OK")
</pallas_src>

<mosaic_0001>
module attributes {stable_mosaic.version = 11 : i64} {
  func.func @actor_net_kernel(%arg0: i32, %arg1: memref<8x128xf32, #tpu.memory_space<vmem>>, %arg2: memref<3x128x128xf32, #tpu.memory_space<vmem>>, %arg3: memref<8x128xf32, #tpu.memory_space<vmem>>, %arg4: memref<8x128xf32, #tpu.memory_space<vmem>>) attributes {dimension_semantics = [#tpu.dimension_semantics<parallel>], iteration_bounds = array<i64: 1>, scalar_prefetch = 0 : i64, scratch_operands = 0 : i64, tpu.core_type = #tpu.core_type<tc>, window_params = [{transform_indices = @transform_0, window_bounds = array<i64: 8, 128>}, {pipeline_mode = #tpu.pipeline_mode<synchronous>, transform_indices = @transform_1, window_bounds = array<i64: 3, 128, 128>}, {pipeline_mode = #tpu.pipeline_mode<synchronous>, transform_indices = @transform_2, window_bounds = array<i64: 8, 128>}, {transform_indices = @transform_3, window_bounds = array<i64: 8, 128>}]} {
    %c0 = arith.constant 0 : index
    %c0_0 = arith.constant 0 : index
    %0 = vector.load %arg1[%c0, %c0_0] : memref<8x128xf32, #tpu.memory_space<vmem>>, vector<8x128xf32>
    %c0_1 = arith.constant 0 : index
    %c0_2 = arith.constant 0 : index
    %c0_3 = arith.constant 0 : index
    %1 = vector.load %arg2[%c0_1, %c0_2, %c0_3] : memref<3x128x128xf32, #tpu.memory_space<vmem>>, vector<1x128x128xf32>
    %2 = vector.shape_cast %1 : vector<1x128x128xf32> to vector<128x128xf32>
    %c1 = arith.constant 1 : index
    %c0_4 = arith.constant 0 : index
    %c0_5 = arith.constant 0 : index
    %3 = vector.load %arg2[%c1, %c0_4, %c0_5] : memref<3x128x128xf32, #tpu.memory_space<vmem>>, vector<1x128x128xf32>
    %4 = vector.shape_cast %3 : vector<1x128x128xf32> to vector<128x128xf32>
    %c2 = arith.constant 2 : index
    %c0_6 = arith.constant 0 : index
    %c0_7 = arith.constant 0 : index
    %5 = vector.load %arg2[%c2, %c0_6, %c0_7] : memref<3x128x128xf32, #tpu.memory_space<vmem>>, vector<1x128x128xf32>
    %6 = vector.shape_cast %5 : vector<1x128x128xf32> to vector<128x128xf32>
    %c0_8 = arith.constant 0 : index
    %c0_9 = arith.constant 0 : index
    %7 = vector.load %arg3[%c0_8, %c0_9] : memref<8x128xf32, #tpu.memory_space<vmem>>, vector<1x128xf32>
    %c1_10 = arith.constant 1 : index
    %c0_11 = arith.constant 0 : index
    %8 = vector.load %arg3[%c1_10, %c0_11] : memref<8x128xf32, #tpu.memory_space<vmem>>, vector<1x128xf32>
    %c2_12 = arith.constant 2 : index
    %c0_13 = arith.constant 0 : index
    %9 = vector.load %arg3[%c2_12, %c0_13] : memref<8x128xf32, #tpu.memory_space<vmem>>, vector<1x128xf32>
    %cst = arith.constant dense<0.000000e+00> : vector<8x128xf32>
    %10 = tpu.matmul %0, %2, %cst {dimension_numbers = #tpu.dot_dimension_numbers<[1], [0], [0], [1], [0, 0, 1, 1], [], []>} : vector<8x128xf32>, vector<128x128xf32>, vector<8x128xf32> -> vector<8x128xf32>
    %11 = vector.broadcast %7 : vector<1x128xf32> to vector<8x128xf32>
    %12 = arith.addf %10, %11 : vector<8x128xf32>
    %cst_14 = arith.constant 0.000000e+00 : f32
    %13 = vector.broadcast %cst_14 : f32 to vector<8x128xf32>
    %14 = arith.maximumf %12, %13 : vector<8x128xf32>
    %cst_15 = arith.constant dense<0.000000e+00> : vector<8x128xf32>
    %15 = tpu.matmul %14, %4, %cst_15 {dimension_numbers = #tpu.dot_dimension_numbers<[1], [0], [0], [1], [0, 0, 1, 1], [], []>} : vector<8x128xf32>, vector<128x128xf32>, vector<8x128xf32> -> vector<8x128xf32>
    %16 = vector.broadcast %8 : vector<1x128xf32> to vector<8x128xf32>
    %17 = arith.addf %15, %16 : vector<8x128xf32>
    %cst_16 = arith.constant 0.000000e+00 : f32
    %18 = vector.broadcast %cst_16 : f32 to vector<8x128xf32>
    %19 = arith.maximumf %17, %18 : vector<8x128xf32>
    %cst_17 = arith.constant dense<0.000000e+00> : vector<8x128xf32>
    %20 = tpu.matmul %19, %6, %cst_17 {dimension_numbers = #tpu.dot_dimension_numbers<[1], [0], [0], [1], [0, 0, 1, 1], [], []>} : vector<8x128xf32>, vector<128x128xf32>, vector<8x128xf32> -> vector<8x128xf32>
    %21 = vector.broadcast %9 : vector<1x128xf32> to vector<8x128xf32>
    %22 = arith.addf %20, %21 : vector<8x128xf32>
    %23 = tpu.iota {dimensions = array<i32: 1>} : vector<8x128xi32>
    %c2_i32 = arith.constant 2 : i32
    %24 = vector.broadcast %c2_i32 : i32 to vector<8x128xi32>
    %25 = arith.cmpi slt, %23, %24 : vector<8x128xi32>
    %cst_18 = arith.constant -1.000000e+30 : f32
    %26 = vector.broadcast %cst_18 : f32 to vector<8x128xf32>
    %27 = arith.select %25, %22, %26 : vector<8x128xi1>, vector<8x128xf32>
    %cst_19 = arith.constant dense<0xFF800000> : vector<8xf32>
    %28 = vector.multi_reduction <maximumf>, %27, %cst_19 [1] : vector<8x128xf32> to vector<8xf32>
    %29 = vector.shape_cast %28 : vector<8xf32> to vector<8x1xf32>
    %30 = vector.broadcast %29 : vector<8x1xf32> to vector<8x128xf32>
    %31 = arith.subf %27, %30 : vector<8x128xf32>
    %32 = math.exp %31 : vector<8x128xf32>
    %cst_20 = arith.constant dense<0.000000e+00> : vector<8xf32>
    %33 = vector.multi_reduction <add>, %32, %cst_20 [1] : vector<8x128xf32> to vector<8xf32>
    %34 = vector.shape_cast %33 : vector<8xf32> to vector<8x1xf32>
    %35 = vector.broadcast %34 : vector<8x1xf32> to vector<8x128xf32>
    %36 = arith.divf %32, %35 : vector<8x128xf32>
    %c0_21 = arith.constant 0 : index
    %c0_22 = arith.constant 0 : index
    %37 = vector.load %arg4[%c0_21, %c0_22] : memref<8x128xf32, #tpu.memory_space<vmem>>, vector<8x128xf32>
    tpu.vector_store %arg4[%c0_21, %c0_22], %36 {strides = array<i32>} : memref<8x128xf32, #tpu.memory_space<vmem>>, vector<8x128xf32>,
    return
  }
  func.func @transform_0(%arg0: i32) -> (i32, i32) {
    %c0_i32 = arith.constant 0 : i32
    %c0_i32_0 = arith.constant 0 : i32
    return %arg0, %c0_i32 : i32, i32
  }
  func.func @transform_1(%arg0: i32) -> (i32, i32, i32) {
    %c0_i32 = arith.constant 0 : i32
    %c0_i32_0 = arith.constant 0 : i32
    %c0_i32_1 = arith.constant 0 : i32
    %c0_i32_2 = arith.constant 0 : i32
    return %c0_i32, %c0_i32_0, %c0_i32_1 : i32, i32, i32
  }
  func.func @transform_2(%arg0: i32) -> (i32, i32) {
    %c0_i32 = arith.constant 0 : i32
    %c0_i32_0 = arith.constant 0 : i32
    %c0_i32_1 = arith.constant 0 : i32
    return %c0_i32, %c0_i32_0 : i32, i32
  }
  func.func @transform_3(%arg0: i32) -> (i32, i32) {
    %c0_i32 = arith.constant 0 : i32
    %c0_i32_0 = arith.constant 0 : i32
    return %arg0, %c0_i32 : i32, i32
  }
}

</mosaic_0001>

<llo_original>
// kernel: actor_net_forward.1
$region0: #{actor_net_forward.1}
  #allocation0 [shape = 'u32[]', space=smem, size = 0x4, offset = 0x4, fixed_abs, tag = 'smem constant byte address 0x4 - core index']
  #allocation1 [shape = 'u32[72,128]{1,0:T(1,128)}', space=vmem, size = 0x9000, scoped, tag = 'internal scratch']
  %s0 = inlined_call_operand.vmem [shape: f32[8,128], index: 0, kind: input, shape index: {}]
  %s1 = inlined_call_operand.hbm [shape: f32[3,128,128], index: 1, kind: input, shape index: {}]
  %s2 = inlined_call_operand.vmem [shape: f32[8,128], index: 2, kind: input, shape index: {}]
  %s3 = inlined_call_operand.vmem [shape: f32[8,128], index: 3, kind: output, shape index: {}]
  %s4 = sld [smem:[#allocation0]]
  $region26: #{actor_net_forward.1} parent=0
    _
  %s6 = ssub.s32 1, %s4
  %s7 = scalar_select 0, %s6, %s4
  $region1: #{actor_net_forward.1} parent=0
    #allocation2 [shape = 'u8[196608]{0}', space=vmem, size = 0x30000, scoped, tag = 'input window, operand 1, single buffered']
    #allocation3 [shape = 's32[1]{0}', space=sflag, size = 0x4, scoped, tag = 'scoped memory for actor_net_forward.1']
    %8 = vsyncpa [#allocation3], 0
    // Predicated region
    $region2: #{actor_net_forward.1} parent=1 // pred_check
      _
    $region3: #{actor_net_forward.1} parent=1 // pred_check_branch
      %10 = sbr.rel (0) target = $region5
    $region4: #{actor_net_forward.1} parent=1 // pred_region
      _
    $region5: #{actor_net_forward.1} parent=1 // pred_fallthru
      _
    // Predicated region
    $region6: #{actor_net_forward.1} parent=1 // pred_check
      _
    $region7: #{actor_net_forward.1} parent=1 // pred_check_branch
      %12 = sbr.rel (0) target = $region9
    $region8: #{actor_net_forward.1} parent=1 // pred_region
      %14 = vsyncadd [#allocation3], 0
      %s15 = sshll.u32 %s1, 4
      %s16 = int_to_ptr.hbm [resolvable:$true] %s15
      %s17 = sshll.u32 [#allocation2], 4
      %s18 = int_to_ptr.vmem [resolvable:$true] %s17
      %23 = dma.hbm_to_vmem [thread:$0]  %s16, 6144, %s18, [#allocation3], 128, 128, 8
    $region9: #{actor_net_forward.1} parent=1 // pred_fallthru
      _
    // Predicated region
    $region10: #{actor_net_forward.1} parent=1 // pred_check
      _
    $region11: #{actor_net_forward.1} parent=1 // pred_check_branch
      %25 = sbr.rel (0) target = $region13
    $region12: #{actor_net_forward.1} parent=1 // pred_region
      _
    $region13: #{actor_net_forward.1} parent=1 // pred_fallthru
      _
    // Predicated region
    $region14: #{actor_net_forward.1} parent=1 // pred_check
      _
    $region15: #{actor_net_forward.1} parent=1 // pred_check_branch
      %27 = sbr.rel (0) target = $region17
    $region16: #{actor_net_forward.1} parent=1 // pred_region
      %29 = dma.done [#allocation3], 6144
    $region17: #{actor_net_forward.1} parent=1 // pred_fallthru
      _
    %v30 = vld [vmem:[%s0] sm:$0xff]
    %v31 = vld [vmem:[#allocation2] sm:$0xff]
    %v32 = vld [vmem:[#allocation2 + $0x8] sm:$0xff]
    %v33 = vld [vmem:[#allocation2 + $0x10] sm:$0xff]
    %v34 = vld [vmem:[#allocation2 + $0x18] sm:$0xff]
    %v35 = vld [vmem:[#allocation2 + $0x20] sm:$0xff]
    %v36 = vld [vmem:[#allocation2 + $0x28] sm:$0xff]
    %v37 = vld [vmem:[#allocation2 + $0x30] sm:$0xff]
    %v38 = vld [vmem:[#allocation2 + $0x38] sm:$0xff]
    %v39 = vld [vmem:[#allocation2 + $0x40] sm:$0xff]
    %v40 = vld [vmem:[#allocation2 + $0x48] sm:$0xff]
    %v41 = vld [vmem:[#allocation2 + $0x50] sm:$0xff]
    %v42 = vld [vmem:[#allocation2 + $0x58] sm:$0xff]
    %v43 = vld [vmem:[#allocation2 + $0x60] sm:$0xff]
    %v44 = vld [vmem:[#allocation2 + $0x68] sm:$0xff]
    %v45 = vld [vmem:[#allocation2 + $0x70] sm:$0xff]
    %v46 = vld [vmem:[#allocation2 + $0x78] sm:$0xff]
    %s47 = scalar_lea.vmem [#allocation2], 128
    %v48 = vld [vmem:[%s47] sm:$0xff]
    %v49 = vld [vmem:[%s47 + $0x8] sm:$0xff]
    %v50 = vld [vmem:[%s47 + $0x10] sm:$0xff]
    %v51 = vld [vmem:[%s47 + $0x18] sm:$0xff]
    %v52 = vld [vmem:[%s47 + $0x20] sm:$0xff]
    %v53 = vld [vmem:[%s47 + $0x28] sm:$0xff]
    %v54 = vld [vmem:[%s47 + $0x30] sm:$0xff]
    %v55 = vld [vmem:[%s47 + $0x38] sm:$0xff]
    %v56 = vld [vmem:[%s47 + $0x40] sm:$0xff]
    %v57 = vld [vmem:[%s47 + $0x48] sm:$0xff]
    %v58 = vld [vmem:[%s47 + $0x50] sm:$0xff]
    %v59 = vld [vmem:[%s47 + $0x58] sm:$0xff]
    %v60 = vld [vmem:[%s47 + $0x60] sm:$0xff]
    %v61 = vld [vmem:[%s47 + $0x68] sm:$0xff]
    %v62 = vld [vmem:[%s47 + $0x70] sm:$0xff]
    %v63 = vld [vmem:[%s47 + $0x78] sm:$0xff]
    %s64 = scalar_lea.vmem [#allocation2], 256
    %v65 = vld [vmem:[%s64] sm:$0xff]
    %v66 = vld [vmem:[%s64 + $0x8] sm:$0xff]
    %v67 = vld [vmem:[%s64 + $0x10] sm:$0xff]
    %v68 = vld [vmem:[%s64 + $0x18] sm:$0xff]
    %v69 = vld [vmem:[%s64 + $0x20] sm:$0xff]
    %v70 = vld [vmem:[%s64 + $0x28] sm:$0xff]
    %v71 = vld [vmem:[%s64 + $0x30] sm:$0xff]
    %v72 = vld [vmem:[%s64 + $0x38] sm:$0xff]
    %v73 = vld [vmem:[%s64 + $0x40] sm:$0xff]
    %v74 = vld [vmem:[%s64 + $0x48] sm:$0xff]
    %v75 = vld [vmem:[%s64 + $0x50] sm:$0xff]
    %v76 = vld [vmem:[%s64 + $0x58] sm:$0xff]
    %v77 = vld [vmem:[%s64 + $0x60] sm:$0xff]
    %v78 = vld [vmem:[%s64 + $0x68] sm:$0xff]
    %v79 = vld [vmem:[%s64 + $0x70] sm:$0xff]
    %v80 = vld [vmem:[%s64 + $0x78] sm:$0xff]
    %v81 = vld [vmem:[%s2] sm:$0x1]
    %v82 = vld [vmem:[%s2 + $0x1] sm:$0x1]
    %v83 = vld [vmem:[%s2 + $0x2] sm:$0x1]
    %v84 = vperm.slane %v81, 0
    %85 = vmatpush.msra.mxu0 %v46
    %86 = vmatpush.msra.mxu0 %v45
    %87 = vmatpush.msra.mxu0 %v44
    %88 = vmatpush.msra.mxu0 %v43
    %89 = vmatpush.msra.mxu0 %v42
    %90 = vmatpush.msra.mxu0 %v41
    %91 = vmatpush.msra.mxu0 %v40
    %92 = vmatpush.msra.mxu0 %v39
    %93 = vmatpush.msra.mxu0 %v38
    %94 = vmatpush.msra.mxu0 %v37
    %95 = vmatpush.msra.mxu0 %v36
    %96 = vmatpush.msra.mxu0 %v35
    %97 = vmatpush.msra.mxu0 %v34
    %98 = vmatpush.msra.mxu0 %v33
    %99 = vmatpush.msra.mxu0 %v32
    %100 = vmatpush.msra.mxu0 %v31
    %101 = vmatmul.f32.gmra.mxu0 %v30
    %v102 = vpop.f32.mrf.mxu0
    %v103 = vadd.f32 %v84, %v102
    %104 = vdwg.mxu0
    %v105 = vmax.f32 %v103, 0.0
    %v106 = vperm.slane %v82, 0
    %107 = vmatpush.msra.mxu0 %v63
    %108 = vmatpush.msra.mxu0 %v62
    %109 = vmatpush.msra.mxu0 %v61
    %110 = vmatpush.msra.mxu0 %v60
    %111 = vmatpush.msra.mxu0 %v59
    %112 = vmatpush.msra.mxu0 %v58
    %113 = vmatpush.msra.mxu0 %v57
    %114 = vmatpush.msra.mxu0 %v56
    %115 = vmatpush.msra.mxu0 %v55
    %116 = vmatpush.msra.mxu0 %v54
    %117 = vmatpush.msra.mxu0 %v53
    %118 = vmatpush.msra.mxu0 %v52
    %119 = vmatpush.msra.mxu0 %v51
    %120 = vmatpush.msra.mxu0 %v50
    %121 = vmatpush.msra.mxu0 %v49
    %122 = vmatpush.msra.mxu0 %v48
    %123 = vmatmul.f32.gmra.mxu0 %v105
    %v124 = vpop.f32.mrf.mxu0
    %v125 = vadd.f32 %v106, %v124
    %126 = vdwg.mxu0
    %v127 = vmax.f32 %v125, 0.0
    %v128 = vperm.slane %v83, 0
    %129 = vmatpush.msra.mxu0 %v80
    %130 = vmatpush.msra.mxu0 %v79
    %131 = vmatpush.msra.mxu0 %v78
    %132 = vmatpush.msra.mxu0 %v77
    %133 = vmatpush.msra.mxu0 %v76
    %134 = vmatpush.msra.mxu0 %v75
    %135 = vmatpush.msra.mxu0 %v74
    %136 = vmatpush.msra.mxu0 %v73
    %137 = vmatpush.msra.mxu0 %v72
    %138 = vmatpush.msra.mxu0 %v71
    %139 = vmatpush.msra.mxu0 %v70
    %140 = vmatpush.msra.mxu0 %v69
    %141 = vmatpush.msra.mxu0 %v68
    %142 = vmatpush.msra.mxu0 %v67
    %143 = vmatpush.msra.mxu0 %v66
    %144 = vmatpush.msra.mxu0 %v65
    %145 = vmatmul.f32.gmra.mxu0 %v127
    %v146 = vpop.f32.mrf.mxu0
    %v147 = vadd.f32 %v128, %v146
    %148 = vdwg.mxu0
    %v149 = vlaneseq
    %v150 = vand.u32 %v149, 127
    %vm151 = vcmp.lt.s32.totalorder %v150, 2
    %v152 = vsel %vm151, %v147, -1e+30
    %153 = vmax.xlane.f32.xlu0 %v152
    %v154 = vpop.xlane.xlu0 %153
    %v155 = vsub.f32 %v152, %v154
    %v156 = vmul.f32 %v155, 1.442695
    %v157 = vpow.pop %v156
    %158 = vadd.xlane.f32.xlu0 %v157
    %v159 = vpop.xlane.xlu0 %158
    %v160 = vrcp.pop %v159
    %v161 = vmul.f32 %v159, %v160
    %v162 = vsub.f32 1.0, %v161
    %v163 = vmul.f32 %v160, %v162
    %v164 = vadd.f32 %v160, %v163
    %vm165 = vweird.f32 %v159
    %vm166 = vweird.f32 %v160
    %vm167 = vmor %vm165, %vm166
    %v168 = vsel %vm167, %v160, %v164
    %v169 = vand.u32 2147483647, %v159
    %vm170 = vcmp.eq.f32.partialorder %v169, 8.507059e+37
    %v171 = vand.u32 %v159, 2147483648
    %v172 = vor.u32 1.1754944e-38, %v171
    %v173 = vsel %vm170, %v172, %v168
    %v174 = vmul.f32 %v157, %v173
    %175 = vst [vmem:[%s3] sm:$0xff] %v174
    // Predicated region
    $region18: #{actor_net_forward.1} parent=1 // pred_check
      _
    $region19: #{actor_net_forward.1} parent=1 // pred_check_branch
      %177 = sbr.rel (0) target = $region21
    $region20: #{actor_net_forward.1} parent=1 // pred_region
      _
    $region21: #{actor_net_forward.1} parent=1 // pred_fallthru
      _
    // Predicated region
    $region22: #{actor_net_forward.1} parent=1 // pred_check
      _
    $region23: #{actor_net_forward.1} parent=1 // pred_check_branch
      %179 = sbr.rel (0) target = $region25
    $region24: #{actor_net_forward.1} parent=1 // pred_region
      _
    $region25: #{actor_net_forward.1} parent=1 // pred_fallthru
      _
    %180 = vsyncpa [#allocation3], 1

</llo_original>
